<compile_context>
chip_gen: v6e
topology: v6e:2x2x1
jax: 0.10.0
libtpu: 0.0.40
codegen_flags: <defaults>
</compile_context>

<pallas_src>
import jax
import jax.numpy as jnp
from jax.experimental import pallas as pl
from jax.experimental.pallas import tpu as pltpu

EPS = 1e-6


def sublayer_connection_kernel(x_ref, a2_ref, b2_ref, w_ref, bl_ref, o_ref):
    # x_ref: (TM, D) x-dtype   a2/b2/bl: (1, D) f32   w_ref: (D, D) mxu dtype
    x = x_ref[...].astype(jnp.float32)
    d = x.shape[-1]

    # --- LayerNorm (PyTorch module semantics: unbiased std, divide by std+eps) ---
    mean = jnp.mean(x, axis=-1, keepdims=True)
    xc = x - mean
    var_unbiased = jnp.sum(xc * xc, axis=-1, keepdims=True) * (1.0 / (d - 1))
    std = jnp.sqrt(var_unbiased)
    # Exact per-row reciprocal (EUP slot has huge slack here; approx buys nothing).
    inv = pl.reciprocal(std + EPS, approx=False)            # (TM, 1)
    normed = a2_ref[...] * (xc * inv) + b2_ref[...]          # (TM, D) f32

    # --- sublayer: Linear(D, D); MXU with f32 accumulation ---
    y = jnp.dot(normed.astype(w_ref.dtype), w_ref[...],
                preferred_element_type=jnp.float32)
    y = y + bl_ref[...]

    # --- dropout (eval mode => identity) + residual in f32 ---
    o_ref[...] = (x + y).astype(o_ref.dtype)


def _round_up(a, b):
    return ((a + b - 1) // b) * b


def _round_down(a, b):
    return (a // b) * b


def _choose_tm(n_rows, d, tile_bytes):
    """Row tile from a byte budget on the f32 working tile.

    HBM-bound regime: amortize the ~0.35 us per-grid-step overhead by moving
    a few MiB per step. Cap TM so the grid keeps >= 2 tiles where possible
    (both v7x TensorCores get work via the 'parallel' axis).
    """
    row_bytes = d * 4                                   # internal math is f32
    tm = max(8, _round_down(max(tile_bytes // row_bytes, 8), 8))
    n8 = _round_up(n_rows, 8)
    if n8 >= 16:
        tm = min(tm, max(8, _round_down(n8 // 2, 8)))   # keep grid length >= 2
    return min(tm, n8)


def sublayer_connection(x, a_2, b_2, w, b_lin, *,
                        tile_bytes=2 << 20, mxu_dtype=jnp.bfloat16):
    """Fused pre-norm residual block:  x + Linear(LayerNorm(x)).

    x: (B, S, D) float32 or bfloat16; output keeps x's dtype, math is f32.
    tile_bytes: byte target for one (TM, D) f32 row tile (~2-4 MiB is the
      HBM-roofline sweet spot on v5e/v6e/v7x alike).
    mxu_dtype: resident-weight / MXU-operand dtype. bfloat16 = fast path
      (intentional precision deviation from the f32 PyTorch Linear),
      float32 = closer parity.
    """
    B, S, D = x.shape
    N = B * S
    x2d = x.reshape(N, D)
    out_dtype = x.dtype

    TM = _choose_tm(N, D, tile_bytes)
    grid = (pl.cdiv(N, TM),)   # Pallas masks the partial tail block; no pad/slice

    a2 = a_2.reshape(1, D).astype(jnp.float32)
    b2 = b_2.reshape(1, D).astype(jnp.float32)
    bl = b_lin.reshape(1, D).astype(jnp.float32)
    wk = w.astype(mxu_dtype)

    in_itemsize = jnp.dtype(x2d.dtype).itemsize
    out_itemsize = jnp.dtype(out_dtype).itemsize
    w_itemsize = jnp.dtype(mxu_dtype).itemsize

    # VMEM plan: x/out tiles double-buffered, constants single-buffered,
    # plus room for the kernel's (TM, D) f32 temporaries and a few MiB headroom.
    in_tile = TM * D * in_itemsize
    out_tile = TM * D * out_itemsize
    f32_tile = TM * D * 4
    w_bytes = D * D * w_itemsize
    vec_bytes = 3 * D * 4
    vmem_budget = (2 * in_tile + 2 * out_tile + w_bytes + vec_bytes
                   + 6 * f32_tile + (4 << 20))
    vmem_limit = int(min(vmem_budget, 48 << 20))   # keep the plan legal on v7x

    cost = pl.CostEstimate(
        flops=2 * N * D * D,
        transcendentals=0,
        bytes_accessed=N * D * (in_itemsize + out_itemsize) + w_bytes + vec_bytes,
    )

    def build(single_buffer_consts):
        if single_buffer_consts:
            # Constant index map => never re-DMA'd; Buffered(1) also drops the
            # pointless second buffer (matters for large resident weights).
            const = lambda shape: pl.BlockSpec(shape, lambda i: (0, 0),
                                               pipeline_mode=pl.Buffered(1))
        else:
            const = lambda shape: pl.BlockSpec(shape, lambda i: (0, 0))
        return pl.pallas_call(
            sublayer_connection_kernel,
            out_shape=jax.ShapeDtypeStruct((N, D), out_dtype),
            grid_spec=pltpu.PrefetchScalarGridSpec(
                num_scalar_prefetch=0,
                grid=grid,
                in_specs=[
                    pl.BlockSpec((TM, D), lambda i: (i, 0)),  # x row tile (pipelined)
                    const((1, D)),                            # layernorm gamma (resident)
                    const((1, D)),                            # layernorm beta  (resident)
                    const((D, D)),                            # linear weight   (resident)
                    const((1, D)),                            # linear bias     (resident)
                ],
                out_specs=pl.BlockSpec((TM, D), lambda i: (i, 0)),
            ),
            compiler_params=pltpu.CompilerParams(
                dimension_semantics=("parallel",),   # independent tiles -> megacore
                vmem_limit_bytes=vmem_limit,
            ),
            cost_estimate=cost,
        )

    try:
        out = build(single_buffer_consts=True)(x2d, a2, b2, wk, bl)
    except Exception:
        # Fallback if this JAX build rejects Buffered(1) on pallas_call inputs.
        out = build(single_buffer_consts=False)(x2d, a2, b2, wk, bl)

    return out.reshape(B, S, D)


def reference(x, a_2, b_2, w, b_lin):
    """Pure-JAX f32 reference mirroring the PyTorch module (eval-mode dropout)."""
    mean = jnp.mean(x, axis=-1, keepdims=True)
    xc = x - mean
    var = jnp.sum(xc * xc, axis=-1, keepdims=True) / (x.shape[-1] - 1)
    std = jnp.sqrt(var)
    normed = a_2 * xc / (std + EPS) + b_2
    y = normed @ w + b_lin
    return x + y


if __name__ == "__main__":
    # Small but lane-dense shapes: D = 128 keeps the output a full vreg lane.
    B, S, D = 2, 8, 128
    key = jax.random.PRNGKey(0)
    kx, kw, kb = jax.random.split(key, 3)

    x = jax.random.normal(kx, (B, S, D), dtype=jnp.float32)

    # LayerNorm params as in __init__: ones / zeros.
    a_2 = jnp.ones((D,), dtype=jnp.float32)
    b_2 = jnp.zeros((D,), dtype=jnp.float32)

    # Deterministic sublayer (Linear D->D) parameters.
    w = jax.random.normal(kw, (D, D), dtype=jnp.float32) * 0.05
    b_lin = jax.random.normal(kb, (D,), dtype=jnp.float32) * 0.01

    out = sublayer_connection(x, a_2, b_2, w, b_lin)
    out = jax.block_until_ready(out)

    ref = reference(x, a_2, b_2, w, b_lin)
    assert out.shape == (B, S, D)
    # Tolerance accounts for the bf16 MXU operands (f32 accumulation); the
    # LayerNorm and residual paths are exact f32 (exact reciprocal now).
    err = jnp.max(jnp.abs(out - ref))
    assert err < 2e-2, f"mismatch vs reference: max abs err = {err}"

    print("KERNEL_OK")
</pallas_src>

<mosaic_0001>
module attributes {stable_mosaic.version = 11 : i64} {
  func.func @sublayer_connection_kernel(%arg0: i32, %arg1: memref<8x128xf32, #tpu.memory_space<vmem>>, %arg2: memref<1x128xf32, #tpu.memory_space<vmem>>, %arg3: memref<1x128xf32, #tpu.memory_space<vmem>>, %arg4: memref<128x128xbf16, #tpu.memory_space<vmem>>, %arg5: memref<1x128xf32, #tpu.memory_space<vmem>>, %arg6: memref<8x128xf32, #tpu.memory_space<vmem>>) attributes {dimension_semantics = [#tpu.dimension_semantics<parallel>], iteration_bounds = array<i64: 2>, scalar_prefetch = 0 : i64, scratch_operands = 0 : i64, tpu.core_type = #tpu.core_type<tc>, window_params = [{transform_indices = @transform_0, window_bounds = array<i64: 8, 128>}, {pipeline_mode = #tpu.pipeline_mode<synchronous>, transform_indices = @transform_1, window_bounds = array<i64: 1, 128>}, {pipeline_mode = #tpu.pipeline_mode<synchronous>, transform_indices = @transform_2, window_bounds = array<i64: 1, 128>}, {pipeline_mode = #tpu.pipeline_mode<synchronous>, transform_indices = @transform_3, window_bounds = array<i64: 128, 128>}, {pipeline_mode = #tpu.pipeline_mode<synchronous>, transform_indices = @transform_4, window_bounds = array<i64: 1, 128>}, {transform_indices = @transform_5, window_bounds = array<i64: 8, 128>}]} {
    %c0 = arith.constant 0 : index
    %c0_0 = arith.constant 0 : index
    %0 = vector.load %arg1[%c0, %c0_0] : memref<8x128xf32, #tpu.memory_space<vmem>>, vector<8x128xf32>
    %cst = arith.constant dense<0.000000e+00> : vector<8xf32>
    %1 = vector.multi_reduction <add>, %0, %cst [1] : vector<8x128xf32> to vector<8xf32>
    %2 = vector.shape_cast %1 : vector<8xf32> to vector<8x1xf32>
    %cst_1 = arith.constant 1.280000e+02 : f32
    %3 = vector.broadcast %cst_1 : f32 to vector<8x1xf32>
    %4 = arith.divf %2, %3 : vector<8x1xf32>
    %5 = vector.broadcast %4 : vector<8x1xf32> to vector<8x128xf32>
    %6 = arith.subf %0, %5 : vector<8x128xf32>
    %7 = arith.mulf %6, %6 : vector<8x128xf32>
    %cst_2 = arith.constant dense<0.000000e+00> : vector<8xf32>
    %8 = vector.multi_reduction <add>, %7, %cst_2 [1] : vector<8x128xf32> to vector<8xf32>
    %9 = vector.shape_cast %8 : vector<8xf32> to vector<8x1xf32>
    %cst_3 = arith.constant 0.00787401571 : f32
    %10 = vector.broadcast %cst_3 : f32 to vector<8x1xf32>
    %11 = arith.mulf %9, %10 : vector<8x1xf32>
    %12 = math.sqrt %11 : vector<8x1xf32>
    %cst_4 = arith.constant 9.99999997E-7 : f32
    %13 = vector.broadcast %cst_4 : f32 to vector<8x1xf32>
    %14 = arith.addf %12, %13 : vector<8x1xf32>
    %15 = tpu.reciprocal %14 : vector<8x1xf32> -> vector<8x1xf32>
    %c0_5 = arith.constant 0 : index
    %c0_6 = arith.constant 0 : index
    %16 = vector.load %arg2[%c0_5, %c0_6] : memref<1x128xf32, #tpu.memory_space<vmem>>, vector<1x128xf32>
    %17 = vector.broadcast %15 : vector<8x1xf32> to vector<8x128xf32>
    %18 = arith.mulf %6, %17 : vector<8x128xf32>
    %19 = vector.broadcast %16 : vector<1x128xf32> to vector<8x128xf32>
    %20 = arith.mulf %19, %18 : vector<8x128xf32>
    %c0_7 = arith.constant 0 : index
    %c0_8 = arith.constant 0 : index
    %21 = vector.load %arg3[%c0_7, %c0_8] : memref<1x128xf32, #tpu.memory_space<vmem>>, vector<1x128xf32>
    %22 = vector.broadcast %21 : vector<1x128xf32> to vector<8x128xf32>
    %23 = arith.addf %20, %22 : vector<8x128xf32>
    %24 = arith.truncf %23 : vector<8x128xf32> to vector<8x128xbf16>
    %c0_9 = arith.constant 0 : index
    %c0_10 = arith.constant 0 : index
    %25 = vector.load %arg4[%c0_9, %c0_10] : memref<128x128xbf16, #tpu.memory_space<vmem>>, vector<128x128xbf16>
    %cst_11 = arith.constant dense<0.000000e+00> : vector<8x128xf32>
    %26 = tpu.matmul %24, %25, %cst_11 {dimension_numbers = #tpu.dot_dimension_numbers<[1], [0], [0], [1], [0, 0, 1, 1], [], []>} : vector<8x128xbf16>, vector<128x128xbf16>, vector<8x128xf32> -> vector<8x128xf32>
    %c0_12 = arith.constant 0 : index
    %c0_13 = arith.constant 0 : index
    %27 = vector.load %arg5[%c0_12, %c0_13] : memref<1x128xf32, #tpu.memory_space<vmem>>, vector<1x128xf32>
    %28 = vector.broadcast %27 : vector<1x128xf32> to vector<8x128xf32>
    %29 = arith.addf %26, %28 : vector<8x128xf32>
    %30 = arith.addf %0, %29 : vector<8x128xf32>
    %c0_14 = arith.constant 0 : index
    %c0_15 = arith.constant 0 : index
    %31 = vector.load %arg6[%c0_14, %c0_15] : memref<8x128xf32, #tpu.memory_space<vmem>>, vector<8x128xf32>
    tpu.vector_store %arg6[%c0_14, %c0_15], %30 {strides = array<i32>} : memref<8x128xf32, #tpu.memory_space<vmem>>, vector<8x128xf32>,
    return
  }
  func.func @transform_0(%arg0: i32) -> (i32, i32) {
    %c0_i32 = arith.constant 0 : i32
    %c0_i32_0 = arith.constant 0 : i32
    return %arg0, %c0_i32 : i32, i32
  }
  func.func @transform_1(%arg0: i32) -> (i32, i32) {
    %c0_i32 = arith.constant 0 : i32
    %c0_i32_0 = arith.constant 0 : i32
    %c0_i32_1 = arith.constant 0 : i32
    return %c0_i32, %c0_i32_0 : i32, i32
  }
  func.func @transform_2(%arg0: i32) -> (i32, i32) {
    %c0_i32 = arith.constant 0 : i32
    %c0_i32_0 = arith.constant 0 : i32
    %c0_i32_1 = arith.constant 0 : i32
    return %c0_i32, %c0_i32_0 : i32, i32
  }
  func.func @transform_3(%arg0: i32) -> (i32, i32) {
    %c0_i32 = arith.constant 0 : i32
    %c0_i32_0 = arith.constant 0 : i32
    %c0_i32_1 = arith.constant 0 : i32
    return %c0_i32, %c0_i32_0 : i32, i32
  }
  func.func @transform_4(%arg0: i32) -> (i32, i32) {
    %c0_i32 = arith.constant 0 : i32
    %c0_i32_0 = arith.constant 0 : i32
    %c0_i32_1 = arith.constant 0 : i32
    return %c0_i32, %c0_i32_0 : i32, i32
  }
  func.func @transform_5(%arg0: i32) -> (i32, i32) {
    %c0_i32 = arith.constant 0 : i32
    %c0_i32_0 = arith.constant 0 : i32
    return %arg0, %c0_i32 : i32, i32
  }
}

module attributes {stable_mosaic.version = 11 : i64} {
  func.func @sublayer_connection_kernel(%arg0: i32, %arg1: memref<8x128xf32, #tpu.memory_space<vmem>>, %arg2: memref<1x128xf32, #tpu.memory_space<vmem>>, %arg3: memref<1x128xf32, #tpu.memory_space<vmem>>, %arg4: memref<128x128xbf16, #tpu.memory_space<vmem>>, %arg5: memref<1x128xf32, #tpu.memory_space<vmem>>, %arg6: memref<8x128xf32, #tpu.memory_space<vmem>>) attributes {dimension_semantics = [#tpu.dimension_semantics<parallel>], iteration_bounds = array<i64: 2>, scalar_prefetch = 0 : i64, scratch_operands = 0 : i64, tpu.core_type = #tpu.core_type<tc>, window_params = [{transform_indices = @transform_0, window_bounds = array<i64: 8, 128>}, {pipeline_mode = #tpu.pipeline_mode<synchronous>, transform_indices = @transform_1, window_bounds = array<i64: 1, 128>}, {pipeline_mode = #tpu.pipeline_mode<synchronous>, transform_indices = @transform_2, window_bounds = array<i64: 1, 128>}, {pipeline_mode = #tpu.pipeline_mode<synchronous>, transform_indices = @transform_3, window_bounds = array<i64: 128, 128>}, {pipeline_mode = #tpu.pipeline_mode<synchronous>, transform_indices = @transform_4, window_bounds = array<i64: 1, 128>}, {transform_indices = @transform_5, window_bounds = array<i64: 8, 128>}]} {
    %c0 = arith.constant 0 : index
    %c0_0 = arith.constant 0 : index
    %0 = vector.load %arg1[%c0, %c0_0] : memref<8x128xf32, #tpu.memory_space<vmem>>, vector<8x128xf32>
    %cst = arith.constant dense<0.000000e+00> : vector<8xf32>
    %1 = vector.multi_reduction <add>, %0, %cst [1] : vector<8x128xf32> to vector<8xf32>
    %2 = vector.shape_cast %1 : vector<8xf32> to vector<8x1xf32>
    %cst_1 = arith.constant 1.280000e+02 : f32
    %3 = vector.broadcast %cst_1 : f32 to vector<8x1xf32>
    %4 = arith.divf %2, %3 : vector<8x1xf32>
    %5 = vector.broadcast %4 : vector<8x1xf32> to vector<8x128xf32>
    %6 = arith.subf %0, %5 : vector<8x128xf32>
    %7 = arith.mulf %6, %6 : vector<8x128xf32>
    %cst_2 = arith.constant dense<0.000000e+00> : vector<8xf32>
    %8 = vector.multi_reduction <add>, %7, %cst_2 [1] : vector<8x128xf32> to vector<8xf32>
    %9 = vector.shape_cast %8 : vector<8xf32> to vector<8x1xf32>
    %cst_3 = arith.constant 0.00787401571 : f32
    %10 = vector.broadcast %cst_3 : f32 to vector<8x1xf32>
    %11 = arith.mulf %9, %10 : vector<8x1xf32>
    %12 = math.sqrt %11 : vector<8x1xf32>
    %cst_4 = arith.constant 9.99999997E-7 : f32
    %13 = vector.broadcast %cst_4 : f32 to vector<8x1xf32>
    %14 = arith.addf %12, %13 : vector<8x1xf32>
    %15 = tpu.reciprocal %14 : vector<8x1xf32> -> vector<8x1xf32>
    %c0_5 = arith.constant 0 : index
    %c0_6 = arith.constant 0 : index
    %16 = vector.load %arg2[%c0_5, %c0_6] : memref<1x128xf32, #tpu.memory_space<vmem>>, vector<1x128xf32>
    %17 = vector.broadcast %15 : vector<8x1xf32> to vector<8x128xf32>
    %18 = arith.mulf %6, %17 : vector<8x128xf32>
    %19 = vector.broadcast %16 : vector<1x128xf32> to vector<8x128xf32>
    %20 = arith.mulf %19, %18 : vector<8x128xf32>
    %c0_7 = arith.constant 0 : index
    %c0_8 = arith.constant 0 : index
    %21 = vector.load %arg3[%c0_7, %c0_8] : memref<1x128xf32, #tpu.memory_space<vmem>>, vector<1x128xf32>
    %22 = vector.broadcast %21 : vector<1x128xf32> to vector<8x128xf32>
    %23 = arith.addf %20, %22 : vector<8x128xf32>
    %24 = arith.truncf %23 : vector<8x128xf32> to vector<8x128xbf16>
    %c0_9 = arith.constant 0 : index
    %c0_10 = arith.constant 0 : index
    %25 = vector.load %arg4[%c0_9, %c0_10] : memref<128x128xbf16, #tpu.memory_space<vmem>>, vector<128x128xbf16>
    %cst_11 = arith.constant dense<0.000000e+00> : vector<8x128xf32>
    %26 = tpu.matmul %24, %25, %cst_11 {dimension_numbers = #tpu.dot_dimension_numbers<[1], [0], [0], [1], [0, 0, 1, 1], [], []>} : vector<8x128xbf16>, vector<128x128xbf16>, vector<8x128xf32> -> vector<8x128xf32>
    %c0_12 = arith.constant 0 : index
    %c0_13 = arith.constant 0 : index
    %27 = vector.load %arg5[%c0_12, %c0_13] : memref<1x128xf32, #tpu.memory_space<vmem>>, vector<1x128xf32>
    %28 = vector.broadcast %27 : vector<1x128xf32> to vector<8x128xf32>
    %29 = arith.addf %26, %28 : vector<8x128xf32>
    %30 = arith.addf %0, %29 : vector<8x128xf32>
    %c0_14 = arith.constant 0 : index
    %c0_15 = arith.constant 0 : index
    %31 = vector.load %arg6[%c0_14, %c0_15] : memref<8x128xf32, #tpu.memory_space<vmem>>, vector<8x128xf32>
    tpu.vector_store %arg6[%c0_14, %c0_15], %30 {strides = array<i32>} : memref<8x128xf32, #tpu.memory_space<vmem>>, vector<8x128xf32>,
    return
  }
  func.func @transform_0(%arg0: i32) -> (i32, i32) {
    %c0_i32 = arith.constant 0 : i32
    %c0_i32_0 = arith.constant 0 : i32
    return %arg0, %c0_i32 : i32, i32
  }
  func.func @transform_1(%arg0: i32) -> (i32, i32) {
    %c0_i32 = arith.constant 0 : i32
    %c0_i32_0 = arith.constant 0 : i32
    %c0_i32_1 = arith.constant 0 : i32
    return %c0_i32, %c0_i32_0 : i32, i32
  }
  func.func @transform_2(%arg0: i32) -> (i32, i32) {
    %c0_i32 = arith.constant 0 : i32
    %c0_i32_0 = arith.constant 0 : i32
    %c0_i32_1 = arith.constant 0 : i32
    return %c0_i32, %c0_i32_0 : i32, i32
  }
  func.func @transform_3(%arg0: i32) -> (i32, i32) {
    %c0_i32 = arith.constant 0 : i32
    %c0_i32_0 = arith.constant 0 : i32
    %c0_i32_1 = arith.constant 0 : i32
    return %c0_i32, %c0_i32_0 : i32, i32
  }
  func.func @transform_4(%arg0: i32) -> (i32, i32) {
    %c0_i32 = arith.constant 0 : i32
    %c0_i32_0 = arith.constant 0 : i32
    %c0_i32_1 = arith.constant 0 : i32
    return %c0_i32, %c0_i32_0 : i32, i32
  }
  func.func @transform_5(%arg0: i32) -> (i32, i32) {
    %c0_i32 = arith.constant 0 : i32
    %c0_i32_0 = arith.constant 0 : i32
    return %arg0, %c0_i32 : i32, i32
  }
}

</mosaic_0001>

<llo_original>
// kernel: tpu_custom_call.1
$region0: #{tpu_custom_call.1}
  #allocation0 [shape = 'u32[]', space=smem, size = 0x4, offset = 0x4, fixed_abs, tag = 'smem constant byte address 0x4 - core index']
  #allocation1 [shape = 'u32[144,128]{1,0:T(1,128)}', space=vmem, size = 0x12000, scoped, tag = 'internal scratch']
  %s0 = inlined_call_operand.hbm [shape: f32[16,128], index: 0, kind: input, shape index: {}]
  %s1 = inlined_call_operand.vmem [shape: f32[1,128], index: 1, kind: input, shape index: {}]
  %s2 = inlined_call_operand.vmem [shape: f32[1,128], index: 2, kind: input, shape index: {}]
  %s3 = inlined_call_operand.hbm [shape: bf16[128,128], index: 3, kind: input, shape index: {}]
  %s4 = inlined_call_operand.vmem [shape: f32[1,128], index: 4, kind: input, shape index: {}]
  %s5 = inlined_call_operand.hbm [shape: f32[16,128], index: 5, kind: output, shape index: {}]
  %s6 = sld [smem:[#allocation0]]
  $region61: #{tpu_custom_call.1} parent=0
    _
  %s8 = ssub.s32 1, %s6
  %s9 = scalar_select 0, %s8, %s6
  $region1: #{tpu_custom_call.1} parent=0
    #allocation2 [shape = 'u8[8192]{0}', space=vmem, size = 0x2000, scoped, tag = 'input window, operand 0']
    #allocation3 [shape = 's32[2]{0}', space=sflag, size = 0x8, scoped, tag = 'scoped memory for tpu_custom_call.1']
    #allocation4 [shape = 's32[2]{0}', space=sflag, size = 0x8, scoped, tag = 'scoped memory for tpu_custom_call.1']
    #allocation5 [shape = 'u8[32768]{0}', space=vmem, size = 0x8000, scoped, tag = 'input window, operand 3, single buffered']
    #allocation6 [shape = 's32[1]{0}', space=sflag, size = 0x4, scoped, tag = 'scoped memory for tpu_custom_call.1']
    #allocation7 [shape = 'u8[8192]{0}', space=vmem, size = 0x2000, scoped, tag = 'output window, operand 0']
    %10 = vsyncpa [#allocation3], 0
    %s11 = scalar_lea.sflag [#allocation3], 1
    %12 = vsyncpa %s11, 0
    %13 = vsyncpa [#allocation6], 0
    %14 = vsyncpa [#allocation4], 0
    %s15 = scalar_lea.sflag [#allocation4], 1
    %16 = vsyncpa %s15, 0
    loop: start=0, step=1, limit=4
    $region2: #{tpu_custom_call.1} parent=1 // loop_pre_header
      _
    $region3: #{tpu_custom_call.1} parent=1 // loop_header
      %s18 = sphi 0, %s22
      %p19 = scmp.ge.s32.totalorder %s18, 4
      %s28 = sphi 0, %s30
      %s31 = sphi 0, %s28
      %s32 = sphi 0, %s31
      %s48 = sphi 0, %s32
      %s52 = sphi 0, %s52
      %s54 = sphi 0, %s52
      %s55 = sphi 0, %s54
      %s69 = sphi 0, %s55
      %s73 = sphi 0, %s73
      %s75 = sphi 0, %s73
      %s76 = sphi 0, %s75
      %s90 = sphi 0, %s76
      %s94 = sphi 0, %s94
      %s96 = sphi 0, %s94
      %s97 = sphi 0, %s96
      %s111 = sphi 0, %s97
      %s115 = sphi 0, %s115
      %s117 = sphi 0, %s115
      %s118 = sphi 0, %s117
      %s132 = sphi 0, %s118
      %s138 = sphi 0, %s140
      %s141 = sphi 0, %s138
      %s142 = sphi 0, %s141
      %s158 = sphi 0, %s142
    $region4: #{tpu_custom_call.1} parent=1 // loop_header_branch
      %21 = sbr.rel (%p19) target = $region8
    $region5: #{tpu_custom_call.1} parent=1 // loop_body
      %s23 = ssub.s32 %s18, 1
      %s24 = ssub.s32 %s18, 2
      %s25 = sadd.s32 %s18, 1
      %s26 = ssub.s32 %s18, %s25
      %p27 = scmp.eq.s32.totalorder %s26, 0
      %s29 = sadd.s32 %s28, 1
      %s30 = scalar_select %p27, %s28, %s29
      %p33 = pneg %p27
      %p34 = scmp.eq.s32.totalorder %s18, 1
      %p35 = por %p33, %p34
      %p36 = scmp.ne.s32.totalorder %s28, %s31
      %p37 = scmp.eq.s32.totalorder %s18, 0
      %p38 = por %p36, %p37
      %p39 = scmp.ne.s32.totalorder %s28, %s31
      %p40 = scmp.eq.s32.totalorder %s23, 1
      %p41 = por %p39, %p40
      %p42 = scmp.ne.s32.totalorder %s31, %s32
      %p43 = scmp.eq.s32.totalorder %s23, 0
      %p44 = por %p42, %p43
      %p45 = scmp.ne.s32.totalorder %s31, %s32
      %p46 = scmp.eq.s32.totalorder %s24, 1
      %p47 = por %p45, %p46
      %p49 = scmp.ne.s32.totalorder %s32, %s48
      %p50 = scmp.eq.s32.totalorder %s24, 0
      %p51 = por %p49, %p50
      %s53 = sadd.s32 %s52, 1
      %p56 = scmp.eq.s32.totalorder %s18, 1
      %p57 = scmp.ne.s32.totalorder %s52, %s54
      %p58 = scmp.eq.s32.totalorder %s18, 0
      %p59 = por %p57, %p58
      %p60 = scmp.ne.s32.totalorder %s52, %s54
      %p61 = scmp.eq.s32.totalorder %s23, 1
      %p62 = por %p60, %p61
      %p63 = scmp.ne.s32.totalorder %s54, %s55
      %p64 = scmp.eq.s32.totalorder %s23, 0
      %p65 = por %p63, %p64
      %p66 = scmp.ne.s32.totalorder %s54, %s55
      %p67 = scmp.eq.s32.totalorder %s24, 1
      %p68 = por %p66, %p67
      %p70 = scmp.ne.s32.totalorder %s55, %s69
      %p71 = scmp.eq.s32.totalorder %s24, 0
      %p72 = por %p70, %p71
      %s74 = sadd.s32 %s73, 1
      %p77 = scmp.eq.s32.totalorder %s18, 1
      %p78 = scmp.ne.s32.totalorder %s73, %s75
      %p79 = scmp.eq.s32.totalorder %s18, 0
      %p80 = por %p78, %p79
      %p81 = scmp.ne.s32.totalorder %s73, %s75
      %p82 = scmp.eq.s32.totalorder %s23, 1
      %p83 = por %p81, %p82
      %p84 = scmp.ne.s32.totalorder %s75, %s76
      %p85 = scmp.eq.s32.totalorder %s23, 0
      %p86 = por %p84, %p85
      %p87 = scmp.ne.s32.totalorder %s75, %s76
      %p88 = scmp.eq.s32.totalorder %s24, 1
      %p89 = por %p87, %p88
      %p91 = scmp.ne.s32.totalorder %s76, %s90
      %p92 = scmp.eq.s32.totalorder %s24, 0
      %p93 = por %p91, %p92
      %s95 = sadd.s32 %s94, 1
      %p98 = scmp.eq.s32.totalorder %s18, 1
      %p99 = scmp.ne.s32.totalorder %s94, %s96
      %p100 = scmp.eq.s32.totalorder %s18, 0
      %p101 = por %p99, %p100
      %p102 = scmp.ne.s32.totalorder %s94, %s96
      %p103 = scmp.eq.s32.totalorder %s23, 1
      %p104 = por %p102, %p103
      %p105 = scmp.ne.s32.totalorder %s96, %s97
      %p106 = scmp.eq.s32.totalorder %s23, 0
      %p107 = por %p105, %p106
      %p108 = scmp.ne.s32.totalorder %s96, %s97
      %p109 = scmp.eq.s32.totalorder %s24, 1
      %p110 = por %p108, %p109
      %p112 = scmp.ne.s32.totalorder %s97, %s111
      %p113 = scmp.eq.s32.totalorder %s24, 0
      %p114 = por %p112, %p113
      %s116 = sadd.s32 %s115, 1
      %p119 = scmp.eq.s32.totalorder %s18, 1
      %p120 = scmp.ne.s32.totalorder %s115, %s117
      %p121 = scmp.eq.s32.totalorder %s18, 0
      %p122 = por %p120, %p121
      %p123 = scmp.ne.s32.totalorder %s115, %s117
      %p124 = scmp.eq.s32.totalorder %s23, 1
      %p125 = por %p123, %p124
      %p126 = scmp.ne.s32.totalorder %s117, %s118
      %p127 = scmp.eq.s32.totalorder %s23, 0
      %p128 = por %p126, %p127
      %p129 = scmp.ne.s32.totalorder %s117, %s118
      %p130 = scmp.eq.s32.totalorder %s24, 1
      %p131 = por %p129, %p130
      %p133 = scmp.ne.s32.totalorder %s118, %s132
      %p134 = scmp.eq.s32.totalorder %s24, 0
      %p135 = por %p133, %p134
      %s136 = ssub.s32 %s18, %s25
      %p137 = scmp.eq.s32.totalorder %s136, 0
      %s139 = sadd.s32 %s138, 1
      %s140 = scalar_select %p137, %s138, %s139
      %p143 = pneg %p137
      %p144 = scmp.eq.s32.totalorder %s18, 1
      %p145 = por %p143, %p144
      %p146 = scmp.ne.s32.totalorder %s138, %s141
      %p147 = scmp.eq.s32.totalorder %s18, 0
      %p148 = por %p146, %p147
      %p149 = scmp.ne.s32.totalorder %s138, %s141
      %p150 = scmp.eq.s32.totalorder %s23, 1
      %p151 = por %p149, %p150
      %p152 = scmp.ne.s32.totalorder %s141, %s142
      %p153 = scmp.eq.s32.totalorder %s23, 0
      %p154 = por %p152, %p153
      %p155 = scmp.ne.s32.totalorder %s141, %s142
      %p156 = scmp.eq.s32.totalorder %s24, 1
      %p157 = por %p155, %p156
      %p159 = scmp.ne.s32.totalorder %s142, %s158
      %p160 = scmp.eq.s32.totalorder %s24, 0
      %p161 = por %p159, %p160
      %p162 = scmp.le.s32.totalorder 1, %s18
      %p163 = scmp.lt.s32.totalorder %s18, 3
      %p164 = pnand %p162, %p163
      %p165 = pneg %p164
      // Predicated region
      $region9: #{tpu_custom_call.1} parent=5 // pred_check
        _
      $region10: #{tpu_custom_call.1} parent=5 // pred_check_branch
        %167 = sbr.rel (%p164) target = $region12
      $region11: #{tpu_custom_call.1} parent=5 // pred_region
        %s168 = ssub.s32 %s18, 1
        // Predicated region
        $region13: #{tpu_custom_call.1} parent=11 // pred_check
          %p169 = pneg %p65
        $region14: #{tpu_custom_call.1} parent=11 // pred_check_branch
          %171 = sbr.rel (%p169) target = $region16
        $region15: #{tpu_custom_call.1} parent=11 // pred_region
          _
        $region16: #{tpu_custom_call.1} parent=11 // pred_fallthru
          _
        // Predicated region
        $region17: #{tpu_custom_call.1} parent=11 // pred_check
          %p172 = pneg %p86
        $region18: #{tpu_custom_call.1} parent=11 // pred_check_branch
          %174 = sbr.rel (%p172) target = $region20
        $region19: #{tpu_custom_call.1} parent=11 // pred_region
          _
        $region20: #{tpu_custom_call.1} parent=11 // pred_fallthru
          _
        // Predicated region
        $region21: #{tpu_custom_call.1} parent=11 // pred_check
          %p175 = pneg %p107
        $region22: #{tpu_custom_call.1} parent=11 // pred_check_branch
          %177 = sbr.rel (%p175) target = $region24
        $region23: #{tpu_custom_call.1} parent=11 // pred_region
          %s179 = ssub.s32 1024, 1024
          %180 = vsyncadd [#allocation6], %s179
          %s181 = sshll.u32 [#allocation5], 4
          %s182 = int_to_ptr.vmem [resolvable:$true] %s181
          %187 = dma.hbm_to_vmem [thread:$0]  %s3, 1024, %s182, [#allocation6], 64, 64, 4
        $region24: #{tpu_custom_call.1} parent=11 // pred_fallthru
          _
        // Predicated region
        $region25: #{tpu_custom_call.1} parent=11 // pred_check
          %p188 = pneg %p128
        $region26: #{tpu_custom_call.1} parent=11 // pred_check_branch
          %190 = sbr.rel (%p188) target = $region28
        $region27: #{tpu_custom_call.1} parent=11 // pred_region
          _
        $region28: #{tpu_custom_call.1} parent=11 // pred_fallthru
          _
      $region12: #{tpu_custom_call.1} parent=5 // pred_fallthru
        _
      %p191 = scmp.lt.s32.totalorder %s18, 2
      // Predicated region
      $region29: #{tpu_custom_call.1} parent=5 // pred_check
        %p192 = pneg %p191
      $region30: #{tpu_custom_call.1} parent=5 // pred_check_branch
        %194 = sbr.rel (%p192) target = $region32
      $region31: #{tpu_custom_call.1} parent=5 // pred_region
        // Predicated region
        $region33: #{tpu_custom_call.1} parent=31 // pred_check
          %p195 = pneg %p38
        $region34: #{tpu_custom_call.1} parent=31 // pred_check_branch
          %197 = sbr.rel (%p195) target = $region36
        $region35: #{tpu_custom_call.1} parent=31 // pred_region
          %s198 = sand.u32 %s28, 1
          %s199 = scalar_lea.sflag [#allocation3], %s198
          %s200 = sand.u32 %s28, 1
          %s201 = smul.addr %s200, 8
          %s202 = scalar_lea.vmem [#allocation2], %s201
          %s204 = ssub.s32 128, 128
          %205 = vsyncadd %s199, %s204
          %s206 = smul.addr %s18, 128
          %s207 = scalar_lea.hbm %s0, %s206
          %s209 = sshll.u32 %s202, 4
          %s210 = int_to_ptr.vmem [resolvable:$true] %s209
          %212 = dma.hbm_to_vmem [thread:$0]  %s207, 128, %s210, %s199
        $region36: #{tpu_custom_call.1} parent=31 // pred_fallthru
          _
      $region32: #{tpu_custom_call.1} parent=5 // pred_fallthru
        _
      %p213 = scmp.le.s32.totalorder 1, %s18
      %p214 = scmp.lt.s32.totalorder %s18, 3
      %p215 = pnand %p213, %p214
      %p216 = pneg %p215
      // Predicated region
      $region37: #{tpu_custom_call.1} parent=5 // pred_check
        _
      $region38: #{tpu_custom_call.1} parent=5 // pred_check_branch
        %218 = sbr.rel (%p215) target = $region40
      $region39: #{tpu_custom_call.1} parent=5 // pred_region
        %s219 = ssub.s32 %s18, 1
        %s220 = sand.u32 %s31, 1
        %s221 = scalar_lea.sflag [#allocation3], %s220
        %s222 = sand.u32 %s31, 1
        %s223 = smul.addr %s222, 8
        %s224 = scalar_lea.vmem [#allocation2], %s223
        // Predicated region
        $region41: #{tpu_custom_call.1} parent=39 // pred_check
          %p225 = pneg %p44
        $region42: #{tpu_custom_call.1} parent=39 // pred_check_branch
          %227 = sbr.rel (%p225) target = $region44
        $region43: #{tpu_custom_call.1} parent=39 // pred_region
          %228 = dma.done %s221, 128
        $region44: #{tpu_custom_call.1} parent=39 // pred_fallthru
          _
        // Predicated region
        $region45: #{tpu_custom_call.1} parent=39 // pred_check
          %p229 = pneg %p107
        $region46: #{tpu_custom_call.1} parent=39 // pred_check_branch
          %231 = sbr.rel (%p229) target = $region48
        $region47: #{tpu_custom_call.1} parent=39 // pred_region
          %232 = dma.done [#allocation6], 1024
        $region48: #{tpu_custom_call.1} parent=39 // pred_fallthru
          _
        %s233 = sand.u32 %s31, 1
        %s234 = scalar_lea.sflag [#allocation3], %s233
        %s235 = sand.u32 %s31, 1
        %s236 = smul.addr %s235, 8
        %s237 = scalar_lea.vmem [#allocation2], %s236
        %p238 = pneg %p44
        %p239 = pneg %p41
        %p240 = pneg %p65
        %p241 = pneg %p62
        %p242 = pneg %p86
        %p243 = pneg %p83
        %p244 = pneg %p107
        %p245 = pneg %p104
        %p246 = pneg %p128
        %p247 = pneg %p125
        %p248 = pneg %p154
        %p249 = pneg %p151
        %s250 = sand.u32 %s141, 1
        %s251 = scalar_lea.sflag [#allocation4], %s250
        %s252 = sand.u32 %s141, 1
        %s253 = smul.addr %s252, 8
        %s254 = scalar_lea.vmem [#allocation7], %s253
        %v256 = vld [vmem:[%s224] sm:$0xff]
        %257 = vadd.xlane.f32.xlu0 %v256
        %v258 = vpop.xlane.xlu0 %257
        %v259 = vrcp.pop 128.0
        %v260 = vmul.f32 %v258, %v259
        %v261 = vsub.f32 %v256, %v260
        %v262 = vmul.f32 %v261, %v261
        %263 = vadd.xlane.f32.xlu0 %v262
        %v264 = vpop.xlane.xlu0 %263
        %v265 = vmul.f32 %v264, 0.007874016
        %v266 = vrsqrt.pop %v265
        %v267 = vmul.f32 %v265, %v266
        %vm268 = vcmp.eq.f32.partialorder %v265, inf
        %v269 = vsel %vm268, %v265, %v267
        %vm270 = vcmp.eq.f32.partialorder %v265, 0.0
        %v271 = vand.u32 %v265, 2147483648
        %v272 = vsel %vm270, %v271, %v269
        %v273 = vadd.f32 %v272, 1e-06
        %v274 = vrcp.pop %v273
        %v275 = vld [vmem:[%s1] sm:$0x1]
        %v276 = vmul.f32 %v261, %v274
        %v278 = vlaneseq
        %v279 = vshrl.u32 %v278, 7
        %v280 = vsub.s32 0, %v279
        %v281 = vrot.slane %v275, %v280
        %v283 = vmul.f32 %v281, %v276
        %v284 = vld [vmem:[%s2] sm:$0x1]
        %v286 = vlaneseq
        %v287 = vshrl.u32 %v286, 7
        %v288 = vsub.s32 0, %v287
        %v289 = vrot.slane %v284, %v288
        %v291 = vadd.f32 %v283, %v289
        %v292 = vpack.c.bf16 %v291, %v291
        %v293 = vld [vmem:[#allocation5] sm:$0xf]
        %v294 = vld [vmem:[#allocation5 + $0x4] sm:$0xf]
        %v295 = vld [vmem:[#allocation5 + $0x8] sm:$0xf]
        %v296 = vld [vmem:[#allocation5 + $0xc] sm:$0xf]
        %v297 = vld [vmem:[#allocation5 + $0x10] sm:$0xf]
        %v298 = vld [vmem:[#allocation5 + $0x14] sm:$0xf]
        %v299 = vld [vmem:[#allocation5 + $0x18] sm:$0xf]
        %v300 = vld [vmem:[#allocation5 + $0x1c] sm:$0xf]
        %v301 = vld [vmem:[#allocation5 + $0x20] sm:$0xf]
        %v302 = vld [vmem:[#allocation5 + $0x24] sm:$0xf]
        %v303 = vld [vmem:[#allocation5 + $0x28] sm:$0xf]
        %v304 = vld [vmem:[#allocation5 + $0x2c] sm:$0xf]
        %v305 = vld [vmem:[#allocation5 + $0x30] sm:$0xf]
        %v306 = vld [vmem:[#allocation5 + $0x34] sm:$0xf]
        %v307 = vld [vmem:[#allocation5 + $0x38] sm:$0xf]
        %v308 = vld [vmem:[#allocation5 + $0x3c] sm:$0xf]
        %v309 = vld [vmem:[%s4] sm:$0x1]
        %v311 = vlaneseq
        %v312 = vshrl.u32 %v311, 7
        %v313 = vsub.s32 0, %v312
        %v314 = vrot.slane %v309, %v313
        %v332 = vunpack.c.l.b16 %v293
        %v333 = vunpack.c.l.b16 %v294
        %v334 = vunpack.c.l.b16 %v295
        %v335 = vunpack.c.l.b16 %v296
        %v336 = vunpack.c.l.b16 %v297
        %v337 = vunpack.c.l.b16 %v298
        %v338 = vunpack.c.l.b16 %v299
        %v339 = vunpack.c.l.b16 %v300
        %v340 = vunpack.c.l.b16 %v301
        %v341 = vunpack.c.l.b16 %v302
        %v342 = vunpack.c.l.b16 %v303
        %v343 = vunpack.c.l.b16 %v304
        %v344 = vunpack.c.l.b16 %v305
        %v345 = vunpack.c.l.b16 %v306
        %v346 = vunpack.c.l.b16 %v307
        %v347 = vunpack.c.l.b16 %v308
        %v348 = vpack.c.b16 %v333, %v332
        %v349 = vpack.c.b16 %v335, %v334
        %v350 = vpack.c.b16 %v337, %v336
        %v351 = vpack.c.b16 %v339, %v338
        %v352 = vpack.c.b16 %v341, %v340
        %v353 = vpack.c.b16 %v343, %v342
        %v354 = vpack.c.b16 %v345, %v344
        %v355 = vpack.c.b16 %v347, %v346
        %364 = vmatprep.subr.bf16.mxu0 0
        %365 = vmatpush1.bf16.msra.mxu0 %v355
        %366 = vmatprep.subr.bf16.mxu0 0
        %367 = vmatpush1.bf16.msra.mxu0 %v354
        %368 = vmatprep.subr.bf16.mxu0 0
        %369 = vmatpush1.bf16.msra.mxu0 %v353
        %370 = vmatprep.subr.bf16.mxu0 0
        %371 = vmatpush1.bf16.msra.mxu0 %v352
        %372 = vmatprep.subr.bf16.mxu0 0
        %373 = vmatpush1.bf16.msra.mxu0 %v351
        %374 = vmatprep.subr.bf16.mxu0 0
        %375 = vmatpush1.bf16.msra.mxu0 %v350
        %376 = vmatprep.subr.bf16.mxu0 0
        %377 = vmatpush1.bf16.msra.mxu0 %v349
        %378 = vmatprep.subr.bf16.mxu0 0
        %379 = vmatpush1.bf16.msra.mxu0 %v348
        %380 = vmatprep.subr.bf16.mxu0 0
        %381 = vmatpush2.bf16.msra.mxu0 0
        %382 = vmatprep.subr.bf16.mxu0 0
        %383 = vmatpush2.bf16.msra.mxu0 0
        %384 = vmatprep.subr.bf16.mxu0 0
        %385 = vmatpush2.bf16.msra.mxu0 0
        %386 = vmatprep.subr.bf16.mxu0 0
        %387 = vmatpush2.bf16.msra.mxu0 0
        %388 = vmatprep.subr.bf16.mxu0 0
        %389 = vmatpush2.bf16.msra.mxu0 0
        %390 = vmatprep.subr.bf16.mxu0 0
        %391 = vmatpush2.bf16.msra.mxu0 0
        %392 = vmatprep.subr.bf16.mxu0 0
        %393 = vmatpush2.bf16.msra.mxu0 0
        %394 = vmatprep.subr.bf16.mxu0 0
        %395 = vmatpush2.bf16.msra.mxu0 0
        %396 = vmatprep.mubr.bf16.mxu0 0
        %397 = vmatmul.mubr.bf16.gmra.mxu0 %v292
        %v398 = vpop.f32.mrf.mxu0
        %v399 = vadd.f32 %v314, %v398
        %v400 = vpop.f32.mrf.mxu0
        %v401 = vpop.f32.mrf.mxu0
        %v402 = vpop.f32.mrf.mxu0
        %403 = vdwg.mxu0
        %v404 = vadd.f32 %v256, %v399
        %405 = vst [vmem:[%s254] sm:$0xff] %v404
        %s406 = sand.u32 %s141, 1
        %s407 = scalar_lea.sflag [#allocation4], %s406
        %s408 = sand.u32 %s141, 1
        %s409 = smul.addr %s408, 8
        %s410 = scalar_lea.vmem [#allocation7], %s409
        // Predicated region
        $region49: #{tpu_custom_call.1} parent=39 // pred_check
          %p411 = pneg %p151
        $region50: #{tpu_custom_call.1} parent=39 // pred_check_branch
          %413 = sbr.rel (%p411) target = $region52
        $region51: #{tpu_custom_call.1} parent=39 // pred_region
          %s415 = ssub.s32 128, 128
          %416 = vsyncadd %s407, %s415
          %s417 = smul.addr %s23, 128
          %s418 = scalar_lea.hbm %s5, %s417
          %s420 = sshll.u32 %s410, 4
          %s421 = int_to_ptr.vmem [resolvable:$true] %s420
          %423 = dma.vmem_to_hbm [thread:$0]  %s421, 128, %s418, %s407
        $region52: #{tpu_custom_call.1} parent=39 // pred_fallthru
          _
      $region40: #{tpu_custom_call.1} parent=5 // pred_fallthru
        _
      %p424 = scmp.le.s32.totalorder 2, %s18
      // Predicated region
      $region53: #{tpu_custom_call.1} parent=5 // pred_check
        %p425 = pneg %p424
      $region54: #{tpu_custom_call.1} parent=5 // pred_check_branch
        %427 = sbr.rel (%p425) target = $region56
      $region55: #{tpu_custom_call.1} parent=5 // pred_region
        %s428 = ssub.s32 %s18, 2
        // Predicated region
        $region57: #{tpu_custom_call.1} parent=55 // pred_check
          %p429 = pneg %p157
        $region58: #{tpu_custom_call.1} parent=55 // pred_check_branch
          %431 = sbr.rel (%p429) target = $region60
        $region59: #{tpu_custom_call.1} parent=55 // pred_region
          %s432 = sand.u32 %s142, 1
          %s433 = scalar_lea.sflag [#allocation4], %s432
          %s434 = sand.u32 %s142, 1
          %s435 = smul.addr %s434, 8
          %s436 = scalar_lea.vmem [#allocation7], %s435
          %437 = dma.done %s433, 128
        $region60: #{tpu_custom_call.1} parent=55 // pred_fallthru
          _
      $region56: #{tpu_custom_call.1} parent=5 // pred_fallthru
        _
    $region6: #{tpu_custom_call.1} parent=1 // loop_footer
      %s22 = sadd.s32 1, %s18
    $region7: #{tpu_custom_call.1} parent=1 // loop_footer_branch
      %17 = sbr.rel target = $region3
    $region8: #{tpu_custom_call.1} parent=1 // loop_exit
      _
    %438 = vsyncpa [#allocation3], 1
    %s439 = scalar_lea.sflag [#allocation3], 1
    %440 = vsyncpa %s439, 1
    %441 = vsyncpa [#allocation6], 1
    %442 = vsyncpa [#allocation4], 1
    %s443 = scalar_lea.sflag [#allocation4], 1
    %444 = vsyncpa %s443, 1

// kernel: tpu_custom_call.1
$region0: #{tpu_custom_call.1}
  #allocation0 [shape = 'u32[]', space=smem, size = 0x4, offset = 0x4, fixed_abs, tag = 'smem constant byte address 0x4 - core index']
  #allocation1 [shape = 'u32[144,128]{1,0:T(1,128)}', space=vmem, size = 0x12000, scoped, tag = 'internal scratch']
  %s0 = inlined_call_operand.hbm [shape: f32[16,128], index: 0, kind: input, shape index: {}]
  %s1 = inlined_call_operand.vmem [shape: f32[1,128], index: 1, kind: input, shape index: {}]
  %s2 = inlined_call_operand.vmem [shape: f32[1,128], index: 2, kind: input, shape index: {}]
  %s3 = inlined_call_operand.hbm [shape: bf16[128,128], index: 3, kind: input, shape index: {}]
  %s4 = inlined_call_operand.vmem [shape: f32[1,128], index: 4, kind: input, shape index: {}]
  %s5 = inlined_call_operand.hbm [shape: f32[16,128], index: 5, kind: output, shape index: {}]
  %s6 = sld [smem:[#allocation0]]
  $region61: #{tpu_custom_call.1} parent=0
    _
  %s8 = ssub.s32 1, %s6
  %s9 = scalar_select 0, %s8, %s6
  $region1: #{tpu_custom_call.1} parent=0
    #allocation2 [shape = 'u8[8192]{0}', space=vmem, size = 0x2000, scoped, tag = 'input window, operand 0']
    #allocation3 [shape = 's32[2]{0}', space=sflag, size = 0x8, scoped, tag = 'scoped memory for tpu_custom_call.1']
    #allocation4 [shape = 's32[2]{0}', space=sflag, size = 0x8, scoped, tag = 'scoped memory for tpu_custom_call.1']
    #allocation5 [shape = 'u8[32768]{0}', space=vmem, size = 0x8000, scoped, tag = 'input window, operand 3, single buffered']
    #allocation6 [shape = 's32[1]{0}', space=sflag, size = 0x4, scoped, tag = 'scoped memory for tpu_custom_call.1']
    #allocation7 [shape = 'u8[8192]{0}', space=vmem, size = 0x2000, scoped, tag = 'output window, operand 0']
    %10 = vsyncpa [#allocation3], 0
    %s11 = scalar_lea.sflag [#allocation3], 1
    %12 = vsyncpa %s11, 0
    %13 = vsyncpa [#allocation6], 0
    %14 = vsyncpa [#allocation4], 0
    %s15 = scalar_lea.sflag [#allocation4], 1
    %16 = vsyncpa %s15, 0
    loop: start=0, step=1, limit=4
    $region2: #{tpu_custom_call.1} parent=1 // loop_pre_header
      _
    $region3: #{tpu_custom_call.1} parent=1 // loop_header
      %s18 = sphi 0, %s22
      %p19 = scmp.ge.s32.totalorder %s18, 4
      %s28 = sphi 0, %s30
      %s31 = sphi 0, %s28
      %s32 = sphi 0, %s31
      %s48 = sphi 0, %s32
      %s52 = sphi 0, %s52
      %s54 = sphi 0, %s52
      %s55 = sphi 0, %s54
      %s69 = sphi 0, %s55
      %s73 = sphi 0, %s73
      %s75 = sphi 0, %s73
      %s76 = sphi 0, %s75
      %s90 = sphi 0, %s76
      %s94 = sphi 0, %s94
      %s96 = sphi 0, %s94
      %s97 = sphi 0, %s96
      %s111 = sphi 0, %s97
      %s115 = sphi 0, %s115
      %s117 = sphi 0, %s115
      %s118 = sphi 0, %s117
      %s132 = sphi 0, %s118
      %s138 = sphi 0, %s140
      %s141 = sphi 0, %s138
      %s142 = sphi 0, %s141
      %s158 = sphi 0, %s142
    $region4: #{tpu_custom_call.1} parent=1 // loop_header_branch
      %21 = sbr.rel (%p19) target = $region8
    $region5: #{tpu_custom_call.1} parent=1 // loop_body
      %s23 = ssub.s32 %s18, 1
      %s24 = ssub.s32 %s18, 2
      %s25 = sadd.s32 %s18, 1
      %s26 = ssub.s32 %s18, %s25
      %p27 = scmp.eq.s32.totalorder %s26, 0
      %s29 = sadd.s32 %s28, 1
      %s30 = scalar_select %p27, %s28, %s29
      %p33 = pneg %p27
      %p34 = scmp.eq.s32.totalorder %s18, 1
      %p35 = por %p33, %p34
      %p36 = scmp.ne.s32.totalorder %s28, %s31
      %p37 = scmp.eq.s32.totalorder %s18, 0
      %p38 = por %p36, %p37
      %p39 = scmp.ne.s32.totalorder %s28, %s31
      %p40 = scmp.eq.s32.totalorder %s23, 1
      %p41 = por %p39, %p40
      %p42 = scmp.ne.s32.totalorder %s31, %s32
      %p43 = scmp.eq.s32.totalorder %s23, 0
      %p44 = por %p42, %p43
      %p45 = scmp.ne.s32.totalorder %s31, %s32
      %p46 = scmp.eq.s32.totalorder %s24, 1
      %p47 = por %p45, %p46
      %p49 = scmp.ne.s32.totalorder %s32, %s48
      %p50 = scmp.eq.s32.totalorder %s24, 0
      %p51 = por %p49, %p50
      %s53 = sadd.s32 %s52, 1
      %p56 = scmp.eq.s32.totalorder %s18, 1
      %p57 = scmp.ne.s32.totalorder %s52, %s54
      %p58 = scmp.eq.s32.totalorder %s18, 0
      %p59 = por %p57, %p58
      %p60 = scmp.ne.s32.totalorder %s52, %s54
      %p61 = scmp.eq.s32.totalorder %s23, 1
      %p62 = por %p60, %p61
      %p63 = scmp.ne.s32.totalorder %s54, %s55
      %p64 = scmp.eq.s32.totalorder %s23, 0
      %p65 = por %p63, %p64
      %p66 = scmp.ne.s32.totalorder %s54, %s55
      %p67 = scmp.eq.s32.totalorder %s24, 1
      %p68 = por %p66, %p67
      %p70 = scmp.ne.s32.totalorder %s55, %s69
      %p71 = scmp.eq.s32.totalorder %s24, 0
      %p72 = por %p70, %p71
      %s74 = sadd.s32 %s73, 1
      %p77 = scmp.eq.s32.totalorder %s18, 1
      %p78 = scmp.ne.s32.totalorder %s73, %s75
      %p79 = scmp.eq.s32.totalorder %s18, 0
      %p80 = por %p78, %p79
      %p81 = scmp.ne.s32.totalorder %s73, %s75
      %p82 = scmp.eq.s32.totalorder %s23, 1
      %p83 = por %p81, %p82
      %p84 = scmp.ne.s32.totalorder %s75, %s76
      %p85 = scmp.eq.s32.totalorder %s23, 0
      %p86 = por %p84, %p85
      %p87 = scmp.ne.s32.totalorder %s75, %s76
      %p88 = scmp.eq.s32.totalorder %s24, 1
      %p89 = por %p87, %p88
      %p91 = scmp.ne.s32.totalorder %s76, %s90
      %p92 = scmp.eq.s32.totalorder %s24, 0
      %p93 = por %p91, %p92
      %s95 = sadd.s32 %s94, 1
      %p98 = scmp.eq.s32.totalorder %s18, 1
      %p99 = scmp.ne.s32.totalorder %s94, %s96
      %p100 = scmp.eq.s32.totalorder %s18, 0
      %p101 = por %p99, %p100
      %p102 = scmp.ne.s32.totalorder %s94, %s96
      %p103 = scmp.eq.s32.totalorder %s23, 1
      %p104 = por %p102, %p103
      %p105 = scmp.ne.s32.totalorder %s96, %s97
      %p106 = scmp.eq.s32.totalorder %s23, 0
      %p107 = por %p105, %p106
      %p108 = scmp.ne.s32.totalorder %s96, %s97
      %p109 = scmp.eq.s32.totalorder %s24, 1
      %p110 = por %p108, %p109
      %p112 = scmp.ne.s32.totalorder %s97, %s111
      %p113 = scmp.eq.s32.totalorder %s24, 0
      %p114 = por %p112, %p113
      %s116 = sadd.s32 %s115, 1
      %p119 = scmp.eq.s32.totalorder %s18, 1
      %p120 = scmp.ne.s32.totalorder %s115, %s117
      %p121 = scmp.eq.s32.totalorder %s18, 0
      %p122 = por %p120, %p121
      %p123 = scmp.ne.s32.totalorder %s115, %s117
      %p124 = scmp.eq.s32.totalorder %s23, 1
      %p125 = por %p123, %p124
      %p126 = scmp.ne.s32.totalorder %s117, %s118
      %p127 = scmp.eq.s32.totalorder %s23, 0
      %p128 = por %p126, %p127
      %p129 = scmp.ne.s32.totalorder %s117, %s118
      %p130 = scmp.eq.s32.totalorder %s24, 1
      %p131 = por %p129, %p130
      %p133 = scmp.ne.s32.totalorder %s118, %s132
      %p134 = scmp.eq.s32.totalorder %s24, 0
      %p135 = por %p133, %p134
      %s136 = ssub.s32 %s18, %s25
      %p137 = scmp.eq.s32.totalorder %s136, 0
      %s139 = sadd.s32 %s138, 1
      %s140 = scalar_select %p137, %s138, %s139
      %p143 = pneg %p137
      %p144 = scmp.eq.s32.totalorder %s18, 1
      %p145 = por %p143, %p144
      %p146 = scmp.ne.s32.totalorder %s138, %s141
      %p147 = scmp.eq.s32.totalorder %s18, 0
      %p148 = por %p146, %p147
      %p149 = scmp.ne.s32.totalorder %s138, %s141
      %p150 = scmp.eq.s32.totalorder %s23, 1
      %p151 = por %p149, %p150
      %p152 = scmp.ne.s32.totalorder %s141, %s142
      %p153 = scmp.eq.s32.totalorder %s23, 0
      %p154 = por %p152, %p153
      %p155 = scmp.ne.s32.totalorder %s141, %s142
      %p156 = scmp.eq.s32.totalorder %s24, 1
      %p157 = por %p155, %p156
      %p159 = scmp.ne.s32.totalorder %s142, %s158
      %p160 = scmp.eq.s32.totalorder %s24, 0
      %p161 = por %p159, %p160
      %p162 = scmp.le.s32.totalorder 1, %s18
      %p163 = scmp.lt.s32.totalorder %s18, 3
      %p164 = pnand %p162, %p163
      %p165 = pneg %p164
      // Predicated region
      $region9: #{tpu_custom_call.1} parent=5 // pred_check
        _
      $region10: #{tpu_custom_call.1} parent=5 // pred_check_branch
        %167 = sbr.rel (%p164) target = $region12
      $region11: #{tpu_custom_call.1} parent=5 // pred_region
        %s168 = ssub.s32 %s18, 1
        // Predicated region
        $region13: #{tpu_custom_call.1} parent=11 // pred_check
          %p169 = pneg %p65
        $region14: #{tpu_custom_call.1} parent=11 // pred_check_branch
          %171 = sbr.rel (%p169) target = $region16
        $region15: #{tpu_custom_call.1} parent=11 // pred_region
          _
        $region16: #{tpu_custom_call.1} parent=11 // pred_fallthru
          _
        // Predicated region
        $region17: #{tpu_custom_call.1} parent=11 // pred_check
          %p172 = pneg %p86
        $region18: #{tpu_custom_call.1} parent=11 // pred_check_branch
          %174 = sbr.rel (%p172) target = $region20
        $region19: #{tpu_custom_call.1} parent=11 // pred_region
          _
        $region20: #{tpu_custom_call.1} parent=11 // pred_fallthru
          _
        // Predicated region
        $region21: #{tpu_custom_call.1} parent=11 // pred_check
          %p175 = pneg %p107
        $region22: #{tpu_custom_call.1} parent=11 // pred_check_branch
          %177 = sbr.rel (%p175) target = $region24
        $region23: #{tpu_custom_call.1} parent=11 // pred_region
          %s179 = ssub.s32 1024, 1024
          %180 = vsyncadd [#allocation6], %s179
          %s181 = sshll.u32 [#allocation5], 4
          %s182 = int_to_ptr.vmem [resolvable:$true] %s181
          %187 = dma.hbm_to_vmem [thread:$0]  %s3, 1024, %s182, [#allocation6], 64, 64, 4
        $region24: #{tpu_custom_call.1} parent=11 // pred_fallthru
          _
        // Predicated region
        $region25: #{tpu_custom_call.1} parent=11 // pred_check
          %p188 = pneg %p128
        $region26: #{tpu_custom_call.1} parent=11 // pred_check_branch
          %190 = sbr.rel (%p188) target = $region28
        $region27: #{tpu_custom_call.1} parent=11 // pred_region
          _
        $region28: #{tpu_custom_call.1} parent=11 // pred_fallthru
          _
      $region12: #{tpu_custom_call.1} parent=5 // pred_fallthru
        _
      %p191 = scmp.lt.s32.totalorder %s18, 2
      // Predicated region
      $region29: #{tpu_custom_call.1} parent=5 // pred_check
        %p192 = pneg %p191
      $region30: #{tpu_custom_call.1} parent=5 // pred_check_branch
        %194 = sbr.rel (%p192) target = $region32
      $region31: #{tpu_custom_call.1} parent=5 // pred_region
        // Predicated region
        $region33: #{tpu_custom_call.1} parent=31 // pred_check
          %p195 = pneg %p38
        $region34: #{tpu_custom_call.1} parent=31 // pred_check_branch
          %197 = sbr.rel (%p195) target = $region36
        $region35: #{tpu_custom_call.1} parent=31 // pred_region
          %s198 = sand.u32 %s28, 1
          %s199 = scalar_lea.sflag [#allocation3], %s198
          %s200 = sand.u32 %s28, 1
          %s201 = smul.addr %s200, 8
          %s202 = scalar_lea.vmem [#allocation2], %s201
          %s204 = ssub.s32 128, 128
          %205 = vsyncadd %s199, %s204
          %s206 = smul.addr %s18, 128
          %s207 = scalar_lea.hbm %s0, %s206
          %s209 = sshll.u32 %s202, 4
          %s210 = int_to_ptr.vmem [resolvable:$true] %s209
          %212 = dma.hbm_to_vmem [thread:$0]  %s207, 128, %s210, %s199
        $region36: #{tpu_custom_call.1} parent=31 // pred_fallthru
          _
      $region32: #{tpu_custom_call.1} parent=5 // pred_fallthru
        _
      %p213 = scmp.le.s32.totalorder 1, %s18
      %p214 = scmp.lt.s32.totalorder %s18, 3
      %p215 = pnand %p213, %p214
      %p216 = pneg %p215
      // Predicated region
      $region37: #{tpu_custom_call.1} parent=5 // pred_check
        _
      $region38: #{tpu_custom_call.1} parent=5 // pred_check_branch
        %218 = sbr.rel (%p215) target = $region40
      $region39: #{tpu_custom_call.1} parent=5 // pred_region
        %s219 = ssub.s32 %s18, 1
        %s220 = sand.u32 %s31, 1
        %s221 = scalar_lea.sflag [#allocation3], %s220
        %s222 = sand.u32 %s31, 1
        %s223 = smul.addr %s222, 8
        %s224 = scalar_lea.vmem [#allocation2], %s223
        // Predicated region
        $region41: #{tpu_custom_call.1} parent=39 // pred_check
          %p225 = pneg %p44
        $region42: #{tpu_custom_call.1} parent=39 // pred_check_branch
          %227 = sbr.rel (%p225) target = $region44
        $region43: #{tpu_custom_call.1} parent=39 // pred_region
          %228 = dma.done %s221, 128
        $region44: #{tpu_custom_call.1} parent=39 // pred_fallthru
          _
        // Predicated region
        $region45: #{tpu_custom_call.1} parent=39 // pred_check
          %p229 = pneg %p107
        $region46: #{tpu_custom_call.1} parent=39 // pred_check_branch
          %231 = sbr.rel (%p229) target = $region48
        $region47: #{tpu_custom_call.1} parent=39 // pred_region
          %232 = dma.done [#allocation6], 1024
        $region48: #{tpu_custom_call.1} parent=39 // pred_fallthru
          _
        %s233 = sand.u32 %s31, 1
        %s234 = scalar_lea.sflag [#allocation3], %s233
        %s235 = sand.u32 %s31, 1
        %s236 = smul.addr %s235, 8
        %s237 = scalar_lea.vmem [#allocation2], %s236
        %p238 = pneg %p44
        %p239 = pneg %p41
        %p240 = pneg %p65
        %p241 = pneg %p62
        %p242 = pneg %p86
        %p243 = pneg %p83
        %p244 = pneg %p107
        %p245 = pneg %p104
        %p246 = pneg %p128
        %p247 = pneg %p125
        %p248 = pneg %p154
        %p249 = pneg %p151
        %s250 = sand.u32 %s141, 1
        %s251 = scalar_lea.sflag [#allocation4], %s250
        %s252 = sand.u32 %s141, 1
        %s253 = smul.addr %s252, 8
        %s254 = scalar_lea.vmem [#allocation7], %s253
        %v256 = vld [vmem:[%s224] sm:$0xff]
        %257 = vadd.xlane.f32.xlu0 %v256
        %v258 = vpop.xlane.xlu0 %257
        %v259 = vrcp.pop 128.0
        %v260 = vmul.f32 %v258, %v259
        %v261 = vsub.f32 %v256, %v260
        %v262 = vmul.f32 %v261, %v261
        %263 = vadd.xlane.f32.xlu0 %v262
        %v264 = vpop.xlane.xlu0 %263
        %v265 = vmul.f32 %v264, 0.007874016
        %v266 = vrsqrt.pop %v265
        %v267 = vmul.f32 %v265, %v266
        %vm268 = vcmp.eq.f32.partialorder %v265, inf
        %v269 = vsel %vm268, %v265, %v267
        %vm270 = vcmp.eq.f32.partialorder %v265, 0.0
        %v271 = vand.u32 %v265, 2147483648
        %v272 = vsel %vm270, %v271, %v269
        %v273 = vadd.f32 %v272, 1e-06
        %v274 = vrcp.pop %v273
        %v275 = vld [vmem:[%s1] sm:$0x1]
        %v276 = vmul.f32 %v261, %v274
        %v278 = vlaneseq
        %v279 = vshrl.u32 %v278, 7
        %v280 = vsub.s32 0, %v279
        %v281 = vrot.slane %v275, %v280
        %v283 = vmul.f32 %v281, %v276
        %v284 = vld [vmem:[%s2] sm:$0x1]
        %v286 = vlaneseq
        %v287 = vshrl.u32 %v286, 7
        %v288 = vsub.s32 0, %v287
        %v289 = vrot.slane %v284, %v288
        %v291 = vadd.f32 %v283, %v289
        %v292 = vpack.c.bf16 %v291, %v291
        %v293 = vld [vmem:[#allocation5] sm:$0xf]
        %v294 = vld [vmem:[#allocation5 + $0x4] sm:$0xf]
        %v295 = vld [vmem:[#allocation5 + $0x8] sm:$0xf]
        %v296 = vld [vmem:[#allocation5 + $0xc] sm:$0xf]
        %v297 = vld [vmem:[#allocation5 + $0x10] sm:$0xf]
        %v298 = vld [vmem:[#allocation5 + $0x14] sm:$0xf]
        %v299 = vld [vmem:[#allocation5 + $0x18] sm:$0xf]
        %v300 = vld [vmem:[#allocation5 + $0x1c] sm:$0xf]
        %v301 = vld [vmem:[#allocation5 + $0x20] sm:$0xf]
        %v302 = vld [vmem:[#allocation5 + $0x24] sm:$0xf]
        %v303 = vld [vmem:[#allocation5 + $0x28] sm:$0xf]
        %v304 = vld [vmem:[#allocation5 + $0x2c] sm:$0xf]
        %v305 = vld [vmem:[#allocation5 + $0x30] sm:$0xf]
        %v306 = vld [vmem:[#allocation5 + $0x34] sm:$0xf]
        %v307 = vld [vmem:[#allocation5 + $0x38] sm:$0xf]
        %v308 = vld [vmem:[#allocation5 + $0x3c] sm:$0xf]
        %v309 = vld [vmem:[%s4] sm:$0x1]
        %v311 = vlaneseq
        %v312 = vshrl.u32 %v311, 7
        %v313 = vsub.s32 0, %v312
        %v314 = vrot.slane %v309, %v313
        %v332 = vunpack.c.l.b16 %v293
        %v333 = vunpack.c.l.b16 %v294
        %v334 = vunpack.c.l.b16 %v295
        %v335 = vunpack.c.l.b16 %v296
        %v336 = vunpack.c.l.b16 %v297
        %v337 = vunpack.c.l.b16 %v298
        %v338 = vunpack.c.l.b16 %v299
        %v339 = vunpack.c.l.b16 %v300
        %v340 = vunpack.c.l.b16 %v301
        %v341 = vunpack.c.l.b16 %v302
        %v342 = vunpack.c.l.b16 %v303
        %v343 = vunpack.c.l.b16 %v304
        %v344 = vunpack.c.l.b16 %v305
        %v345 = vunpack.c.l.b16 %v306
        %v346 = vunpack.c.l.b16 %v307
        %v347 = vunpack.c.l.b16 %v308
        %v348 = vpack.c.b16 %v333, %v332
        %v349 = vpack.c.b16 %v335, %v334
        %v350 = vpack.c.b16 %v337, %v336
        %v351 = vpack.c.b16 %v339, %v338
        %v352 = vpack.c.b16 %v341, %v340
        %v353 = vpack.c.b16 %v343, %v342
        %v354 = vpack.c.b16 %v345, %v344
        %v355 = vpack.c.b16 %v347, %v346
        %364 = vmatprep.subr.bf16.mxu0 0
        %365 = vmatpush1.bf16.msra.mxu0 %v355
        %366 = vmatprep.subr.bf16.mxu0 0
        %367 = vmatpush1.bf16.msra.mxu0 %v354
        %368 = vmatprep.subr.bf16.mxu0 0
        %369 = vmatpush1.bf16.msra.mxu0 %v353
        %370 = vmatprep.subr.bf16.mxu0 0
        %371 = vmatpush1.bf16.msra.mxu0 %v352
        %372 = vmatprep.subr.bf16.mxu0 0
        %373 = vmatpush1.bf16.msra.mxu0 %v351
        %374 = vmatprep.subr.bf16.mxu0 0
        %375 = vmatpush1.bf16.msra.mxu0 %v350
        %376 = vmatprep.subr.bf16.mxu0 0
        %377 = vmatpush1.bf16.msra.mxu0 %v349
        %378 = vmatprep.subr.bf16.mxu0 0
        %379 = vmatpush1.bf16.msra.mxu0 %v348
        %380 = vmatprep.subr.bf16.mxu0 0
        %381 = vmatpush2.bf16.msra.mxu0 0
        %382 = vmatprep.subr.bf16.mxu0 0
        %383 = vmatpush2.bf16.msra.mxu0 0
        %384 = vmatprep.subr.bf16.mxu0 0
        %385 = vmatpush2.bf16.msra.mxu0 0
        %386 = vmatprep.subr.bf16.mxu0 0
        %387 = vmatpush2.bf16.msra.mxu0 0
        %388 = vmatprep.subr.bf16.mxu0 0
        %389 = vmatpush2.bf16.msra.mxu0 0
        %390 = vmatprep.subr.bf16.mxu0 0
        %391 = vmatpush2.bf16.msra.mxu0 0
        %392 = vmatprep.subr.bf16.mxu0 0
        %393 = vmatpush2.bf16.msra.mxu0 0
        %394 = vmatprep.subr.bf16.mxu0 0
        %395 = vmatpush2.bf16.msra.mxu0 0
        %396 = vmatprep.mubr.bf16.mxu0 0
        %397 = vmatmul.mubr.bf16.gmra.mxu0 %v292
        %v398 = vpop.f32.mrf.mxu0
        %v399 = vadd.f32 %v314, %v398
        %v400 = vpop.f32.mrf.mxu0
        %v401 = vpop.f32.mrf.mxu0
        %v402 = vpop.f32.mrf.mxu0
        %403 = vdwg.mxu0
        %v404 = vadd.f32 %v256, %v399
        %405 = vst [vmem:[%s254] sm:$0xff] %v404
        %s406 = sand.u32 %s141, 1
        %s407 = scalar_lea.sflag [#allocation4], %s406
        %s408 = sand.u32 %s141, 1
        %s409 = smul.addr %s408, 8
        %s410 = scalar_lea.vmem [#allocation7], %s409
        // Predicated region
        $region49: #{tpu_custom_call.1} parent=39 // pred_check
          %p411 = pneg %p151
        $region50: #{tpu_custom_call.1} parent=39 // pred_check_branch
          %413 = sbr.rel (%p411) target = $region52
        $region51: #{tpu_custom_call.1} parent=39 // pred_region
          %s415 = ssub.s32 128, 128
          %416 = vsyncadd %s407, %s415
          %s417 = smul.addr %s23, 128
          %s418 = scalar_lea.hbm %s5, %s417
          %s420 = sshll.u32 %s410, 4
          %s421 = int_to_ptr.vmem [resolvable:$true] %s420
          %423 = dma.vmem_to_hbm [thread:$0]  %s421, 128, %s418, %s407
        $region52: #{tpu_custom_call.1} parent=39 // pred_fallthru
          _
      $region40: #{tpu_custom_call.1} parent=5 // pred_fallthru
        _
      %p424 = scmp.le.s32.totalorder 2, %s18
      // Predicated region
      $region53: #{tpu_custom_call.1} parent=5 // pred_check
        %p425 = pneg %p424
      $region54: #{tpu_custom_call.1} parent=5 // pred_check_branch
        %427 = sbr.rel (%p425) target = $region56
      $region55: #{tpu_custom_call.1} parent=5 // pred_region
        %s428 = ssub.s32 %s18, 2
        // Predicated region
        $region57: #{tpu_custom_call.1} parent=55 // pred_check
          %p429 = pneg %p157
        $region58: #{tpu_custom_call.1} parent=55 // pred_check_branch
          %431 = sbr.rel (%p429) target = $region60
        $region59: #{tpu_custom_call.1} parent=55 // pred_region
          %s432 = sand.u32 %s142, 1
          %s433 = scalar_lea.sflag [#allocation4], %s432
          %s434 = sand.u32 %s142, 1
          %s435 = smul.addr %s434, 8
          %s436 = scalar_lea.vmem [#allocation7], %s435
          %437 = dma.done %s433, 128
        $region60: #{tpu_custom_call.1} parent=55 // pred_fallthru
          _
      $region56: #{tpu_custom_call.1} parent=5 // pred_fallthru
        _
    $region6: #{tpu_custom_call.1} parent=1 // loop_footer
      %s22 = sadd.s32 1, %s18
    $region7: #{tpu_custom_call.1} parent=1 // loop_footer_branch
      %17 = sbr.rel target = $region3
    $region8: #{tpu_custom_call.1} parent=1 // loop_exit
      _
    %438 = vsyncpa [#allocation3], 1
    %s439 = scalar_lea.sflag [#allocation3], 1
    %440 = vsyncpa %s439, 1
    %441 = vsyncpa [#allocation6], 1
    %442 = vsyncpa [#allocation4], 1
    %s443 = scalar_lea.sflag [#allocation4], 1
    %444 = vsyncpa %s443, 1

</llo_original>
